<compile_context>
chip_gen: v7x
topology: tpu7x:2x2x1
jax: 0.10.0
libtpu: 0.0.40
codegen_flags: <defaults>
</compile_context>

<pallas_src>
import functools
from math import log, pi

import jax
import jax.numpy as jnp
from jax.experimental import pallas as pl
from jax.experimental.pallas import tpu as pltpu


# ----------------------------------------------------------------------------
# Lanczos lgamma (g=5, n=6, Numerical Recipes coefficients) rewritten as a
# single rational polynomial.  Valid for arguments z >= 1 (z = k+1, k >= 0).
# ----------------------------------------------------------------------------
_LANCZOS_G = 5.0
_LANCZOS_COEF = (
    1.000000000190015,
    76.18009172947146,
    -86.50532032941677,
    24.01409824083091,
    -1.231739572450155,
    0.1208650973866179e-2,
    -0.5395239384953e-5,
)
_HALF_LOG_2PI = 0.5 * log(2.0 * pi)


def _expand_lanczos_rational():
    """A(x) = c0 + sum_i c_i/(x+i)  ->  N(x)/D(x), coefficients (ascending)."""
    def pmul(p, q):
        r = [0.0] * (len(p) + len(q) - 1)
        for ai, a in enumerate(p):
            for bi, b in enumerate(q):
                r[ai + bi] += a * b
        return r

    n_terms = len(_LANCZOS_COEF) - 1            # 6
    den = [1.0]                                 # D(x) = prod_{i=1..6} (x + i)
    for i in range(1, n_terms + 1):
        den = pmul(den, [float(i), 1.0])
    num = [_LANCZOS_COEF[0] * c for c in den]   # c0 * D(x)
    for i in range(1, n_terms + 1):             # + c_i * D(x)/(x+i)
        p = [1.0]
        for j in range(1, n_terms + 1):
            if j != i:
                p = pmul(p, [float(j), 1.0])
        for idx, c in enumerate(p):
            num[idx] += _LANCZOS_COEF[i] * c
    return tuple(num), tuple(den)


_LG_NUM, _LG_DEN = _expand_lanczos_rational()


def _horner(z, coeffs):
    """Evaluate polynomial with ascending coefficients `coeffs` at z (VPU only)."""
    acc = coeffs[-1] * z + coeffs[-2]
    for c in coeffs[-3::-1]:
        acc = acc * z + c
    return acc


def _lgamma(z):
    """log Gamma(z) for z >= 1 via Lanczos g=5: 2 Horner chains + 3 logs."""
    x = z - 1.0
    t = x + (_LANCZOS_G + 0.5)
    return (_HALF_LOG_2PI + (x + 0.5) * jnp.log(t) - t
            + jnp.log(_horner(x, _LG_NUM)) - jnp.log(_horner(x, _LG_DEN)))


# ----------------------------------------------------------------------------
# Poisson log-likelihood kernel: lane-dense, parallel grid, per-block partials.
# ----------------------------------------------------------------------------
_LANES = 128


def _poisson_ll_kernel(k_ref, lam_ref, out_ref, *, dt, total, block_elems,
                       masked):
    i = pl.program_id(0)
    k = k_ref[...].astype(jnp.float32)
    lam = lam_ref[...].astype(jnp.float32)
    if dt != 1.0:
        lam = lam * dt
    ll = k * jnp.log(lam) - lam - _lgamma(k + 1.0)

    def store(v):
        # (block_rows, 128) -> (block_rows//8, 8, 128) -> sum over leading axis.
        # Pure vreg-wise VALU adds; no XLU cross-lane reduce in the kernel.
        out_ref[...] = v.reshape(-1, 8, _LANES).sum(axis=0)

    if masked:
        last = pl.num_programs(0) - 1

        @pl.when(i != last)
        def _():
            store(ll)

        @pl.when(i == last)          # only the final block can hold padding
        def _():
            rid = jax.lax.broadcasted_iota(jnp.int32, ll.shape, 0)
            lid = jax.lax.broadcasted_iota(jnp.int32, ll.shape, 1)
            flat = i * block_elems + rid * _LANES + lid
            store(jnp.where(flat < total, ll, 0.0))
    else:
        store(ll)


@functools.partial(jax.jit, static_argnames=("dt", "block_rows"))
def poisson_loglikelihood(k, lam, dt=1.0, *, block_rows=None):
    """(k*log(lam*dt) - lam*dt - lgamma(k+1)).mean(axis=0).sum()  (scalar)."""
    assert k.shape == lam.shape, (k.shape, lam.shape)
    batch = k.shape[0]
    total = int(k.size)

    kf = jnp.ravel(k)
    lf = jnp.ravel(lam)

    # Lane-dense layout: (rows, 128) with rows >= 8.  Pad the flat arrays only
    # when needed (ragged last lane-row or < 8 rows); lane-aligned inputs of
    # >= 1024 elements take the pad-free fast path (reshape is free).
    rows = max(8, pl.cdiv(total, _LANES))
    padded_elems = rows * _LANES
    if padded_elems != total:
        kf = jnp.pad(kf, (0, padded_elems - total))
        lf = jnp.pad(lf, (0, padded_elems - total))
    k2 = kf.reshape(rows, _LANES)
    l2 = lf.reshape(rows, _LANES)

    max_block = (rows // 8) * 8                      # multiple of 8, <= rows
    if block_rows is None:
        block_rows = min(2048, max_block)
    else:
        block_rows = max(8, (int(block_rows) // 8) * 8)
        block_rows = min(block_rows, max_block)
    grid_n = pl.cdiv(rows, block_rows)
    masked = (grid_n * block_rows * _LANES != total)  # pad or partial last block

    kern = functools.partial(
        _poisson_ll_kernel, dt=float(dt), total=total,
        block_elems=int(block_rows * _LANES), masked=bool(masked))

    partials = pl.pallas_call(
        kern,
        out_shape=jax.ShapeDtypeStruct((grid_n * 8, _LANES), jnp.float32),
        grid=(grid_n,),
        in_specs=[pl.BlockSpec((block_rows, _LANES), lambda i: (i, 0)),
                  pl.BlockSpec((block_rows, _LANES), lambda i: (i, 0))],
        out_specs=pl.BlockSpec((8, _LANES), lambda i: (i, 0)),
        compiler_params=pltpu.CompilerParams(
            dimension_semantics=("parallel",)),
    )(k2, l2)

    # Tiny final reduce (grid_n*8*128 f32) + mean-over-batch scale.
    return jnp.sum(partials) * (1.0 / float(batch))


class LogLikelihoodPoisson:
    """Pallas port of the PyTorch LogLikelihoodPoisson module."""

    def __init__(self, dt=1.0, device='cpu'):  # device kept for signature parity
        self.dt = dt

    def forward(self, k, lam):
        return poisson_loglikelihood(k, lam, dt=self.dt)

    __call__ = forward


# ----------------------------------------------------------------------------
if __name__ == "__main__":
    key = jax.random.PRNGKey(0)
    keys = jax.random.split(key, 10)

    def reference(k, lam, dt):
        k = jnp.asarray(k, jnp.float32)
        lam = jnp.asarray(lam, jnp.float32) * dt
        return jnp.sum(jnp.mean(
            k * jnp.log(lam) - lam - jax.scipy.special.gammaln(k + 1.0), axis=0))

    def check(got, want, name):
        got, want = float(got), float(want)
        tol = 2e-3 * max(1.0, abs(want))
        assert abs(got - want) < tol, (name, got, want)

    # case 1: small lane-aligned shape (single padded block), dt != 1, module API
    B, T, C = 2, 8, 16
    k1 = jax.random.poisson(keys[0], 2.0, (B, T, C)).astype(jnp.float32)
    lam1 = jax.nn.softplus(jax.random.normal(keys[1], (B, T, C))) + 0.05
    mod = LogLikelihoodPoisson(dt=0.01)
    out1 = mod(k1, lam1)
    jax.block_until_ready(out1)
    check(out1, reference(k1, lam1, 0.01), "case1")

    # case 2: ragged shape + integer counts (in-kernel cast, masked last block)
    B2, T2, C2 = 3, 7, 5
    k2 = jax.random.poisson(keys[2], 4.0, (B2, T2, C2))          # int32 counts
    lam2 = jax.nn.softplus(jax.random.normal(keys[3], (B2, T2, C2))) + 0.05
    out2 = poisson_loglikelihood(k2, lam2, dt=1.0)
    jax.block_until_ready(out2)
    check(out2, reference(k2, lam2, 1.0), "case2")

    # case 3: multi-block "parallel" grid, exact tiling (no mask anywhere)
    B3, T3, C3 = 4, 32, 48                   # total = 6144 -> rows = 48
    k3 = jax.random.poisson(keys[4], 3.0, (B3, T3, C3)).astype(jnp.float32)
    lam3 = jax.nn.softplus(jax.random.normal(keys[5], (B3, T3, C3))) + 0.05
    out3 = poisson_loglikelihood(k3, lam3, dt=1.0, block_rows=16)   # grid=(3,)
    jax.block_until_ready(out3)
    check(out3, reference(k3, lam3, 1.0), "case3")

    # case 4: multi-block grid + ragged tail (mask applied on last block only)
    B4, T4, C4 = 5, 37, 11                   # total = 2035 -> rows = 16
    k4 = jax.random.poisson(keys[6], 5.0, (B4, T4, C4)).astype(jnp.float32)
    lam4 = jax.nn.softplus(jax.random.normal(keys[7], (B4, T4, C4))) + 0.05
    out4 = poisson_loglikelihood(k4, lam4, dt=0.1, block_rows=8)    # grid=(2,)
    jax.block_until_ready(out4)
    check(out4, reference(k4, lam4, 0.1), "case4")

    # case 5: bf16 intensities (no wrapper-side cast pass; upcast in kernel)
    B5, T5, C5 = 2, 16, 64                   # total = 2048 -> rows = 16, no pad
    k5 = jax.random.poisson(keys[8], 3.0, (B5, T5, C5)).astype(jnp.float32)
    lam5 = (jax.nn.softplus(jax.random.normal(keys[9], (B5, T5, C5))) + 0.05
            ).astype(jnp.bfloat16)
    out5 = poisson_loglikelihood(k5, lam5, dt=1.0)
    jax.block_until_ready(out5)
    check(out5, reference(k5, lam5.astype(jnp.float32), 1.0), "case5")

    print("KERNEL_OK")
</pallas_src>

<mosaic_0001>
module attributes {stable_mosaic.version = 11 : i64} {
  func.func @_poisson_ll_kernel(%arg0: i32, %arg1: memref<8x128xf32, #tpu.memory_space<vmem>>, %arg2: memref<8x128xf32, #tpu.memory_space<vmem>>, %arg3: memref<8x128xf32, #tpu.memory_space<vmem>>) attributes {dimension_semantics = [#tpu.dimension_semantics<parallel>], iteration_bounds = array<i64: 1>, scalar_prefetch = 0 : i64, scratch_operands = 0 : i64, tpu.core_type = #tpu.core_type<tc>, window_params = [{transform_indices = @transform_0, window_bounds = array<i64: 8, 128>}, {transform_indices = @transform_1, window_bounds = array<i64: 8, 128>}, {transform_indices = @transform_2, window_bounds = array<i64: 8, 128>}]} {
    %c0 = arith.constant 0 : index
    %c0_0 = arith.constant 0 : index
    %0 = vector.load %arg1[%c0, %c0_0] : memref<8x128xf32, #tpu.memory_space<vmem>>, vector<8x128xf32>
    %c0_1 = arith.constant 0 : index
    %c0_2 = arith.constant 0 : index
    %1 = vector.load %arg2[%c0_1, %c0_2] : memref<8x128xf32, #tpu.memory_space<vmem>>, vector<8x128xf32>
    %cst = arith.constant 0.00999999977 : f32
    %2 = vector.broadcast %cst : f32 to vector<8x128xf32>
    %3 = arith.mulf %1, %2 : vector<8x128xf32>
    %4 = math.log %3 : vector<8x128xf32>
    %5 = arith.mulf %0, %4 : vector<8x128xf32>
    %6 = arith.subf %5, %3 : vector<8x128xf32>
    %cst_3 = arith.constant 1.000000e+00 : f32
    %7 = vector.broadcast %cst_3 : f32 to vector<8x128xf32>
    %8 = arith.addf %0, %7 : vector<8x128xf32>
    %cst_4 = arith.constant 1.000000e+00 : f32
    %9 = vector.broadcast %cst_4 : f32 to vector<8x128xf32>
    %10 = arith.subf %8, %9 : vector<8x128xf32>
    %cst_5 = arith.constant 5.500000e+00 : f32
    %11 = vector.broadcast %cst_5 : f32 to vector<8x128xf32>
    %12 = arith.addf %10, %11 : vector<8x128xf32>
    %cst_6 = arith.constant 5.000000e-01 : f32
    %13 = vector.broadcast %cst_6 : f32 to vector<8x128xf32>
    %14 = arith.addf %10, %13 : vector<8x128xf32>
    %15 = math.log %12 : vector<8x128xf32>
    %16 = arith.mulf %14, %15 : vector<8x128xf32>
    %cst_7 = arith.constant 0.918938517 : f32
    %17 = vector.broadcast %cst_7 : f32 to vector<8x128xf32>
    %18 = arith.addf %17, %16 : vector<8x128xf32>
    %19 = arith.subf %18, %12 : vector<8x128xf32>
    %cst_8 = arith.constant 1.000000e+00 : f32
    %20 = vector.broadcast %cst_8 : f32 to vector<8x128xf32>
    %21 = arith.mulf %20, %10 : vector<8x128xf32>
    %cst_9 = arith.constant 33.4583321 : f32
    %22 = vector.broadcast %cst_9 : f32 to vector<8x128xf32>
    %23 = arith.addf %21, %22 : vector<8x128xf32>
    %24 = arith.mulf %23, %10 : vector<8x128xf32>
    %cst_10 = arith.constant 466.334198 : f32
    %25 = vector.broadcast %cst_10 : f32 to vector<8x128xf32>
    %26 = arith.addf %24, %25 : vector<8x128xf32>
    %27 = arith.mulf %26, %10 : vector<8x128xf32>
    %cst_11 = arith.constant 3465.70947 : f32
    %28 = vector.broadcast %cst_11 : f32 to vector<8x128xf32>
    %29 = arith.addf %27, %28 : vector<8x128xf32>
    %30 = arith.mulf %29, %10 : vector<8x128xf32>
    %cst_12 = arith.constant 14484.9141 : f32
    %31 = vector.broadcast %cst_12 : f32 to vector<8x128xf32>
    %32 = arith.addf %30, %31 : vector<8x128xf32>
    %33 = arith.mulf %32, %10 : vector<8x128xf32>
    %cst_13 = arith.constant 32281.0645 : f32
    %34 = vector.broadcast %cst_13 : f32 to vector<8x128xf32>
    %35 = arith.addf %33, %34 : vector<8x128xf32>
    %36 = arith.mulf %35, %10 : vector<8x128xf32>
    %cst_14 = arith.constant 29969.5938 : f32
    %37 = vector.broadcast %cst_14 : f32 to vector<8x128xf32>
    %38 = arith.addf %36, %37 : vector<8x128xf32>
    %39 = math.log %38 : vector<8x128xf32>
    %40 = arith.addf %19, %39 : vector<8x128xf32>
    %cst_15 = arith.constant 1.000000e+00 : f32
    %41 = vector.broadcast %cst_15 : f32 to vector<8x128xf32>
    %42 = arith.mulf %41, %10 : vector<8x128xf32>
    %cst_16 = arith.constant 2.100000e+01 : f32
    %43 = vector.broadcast %cst_16 : f32 to vector<8x128xf32>
    %44 = arith.addf %42, %43 : vector<8x128xf32>
    %45 = arith.mulf %44, %10 : vector<8x128xf32>
    %cst_17 = arith.constant 1.750000e+02 : f32
    %46 = vector.broadcast %cst_17 : f32 to vector<8x128xf32>
    %47 = arith.addf %45, %46 : vector<8x128xf32>
    %48 = arith.mulf %47, %10 : vector<8x128xf32>
    %cst_18 = arith.constant 7.350000e+02 : f32
    %49 = vector.broadcast %cst_18 : f32 to vector<8x128xf32>
    %50 = arith.addf %48, %49 : vector<8x128xf32>
    %51 = arith.mulf %50, %10 : vector<8x128xf32>
    %cst_19 = arith.constant 1.624000e+03 : f32
    %52 = vector.broadcast %cst_19 : f32 to vector<8x128xf32>
    %53 = arith.addf %51, %52 : vector<8x128xf32>
    %54 = arith.mulf %53, %10 : vector<8x128xf32>
    %cst_20 = arith.constant 1.764000e+03 : f32
    %55 = vector.broadcast %cst_20 : f32 to vector<8x128xf32>
    %56 = arith.addf %54, %55 : vector<8x128xf32>
    %57 = arith.mulf %56, %10 : vector<8x128xf32>
    %cst_21 = arith.constant 7.200000e+02 : f32
    %58 = vector.broadcast %cst_21 : f32 to vector<8x128xf32>
    %59 = arith.addf %57, %58 : vector<8x128xf32>
    %60 = math.log %59 : vector<8x128xf32>
    %61 = arith.subf %40, %60 : vector<8x128xf32>
    %62 = arith.subf %6, %61 : vector<8x128xf32>
    %c0_i32 = arith.constant 0 : i32
    %63 = arith.cmpi ne, %arg0, %c0_i32 : i32
    %64 = arith.extui %63 : i1 to i32
    %c0_i32_22 = arith.constant 0 : i32
    %65 = arith.cmpi ne, %64, %c0_i32_22 : i32
    scf.if %65 {
      %69 = vector.shape_cast %62 : vector<8x128xf32> to vector<1x8x128xf32>
      %cst_25 = arith.constant dense<0.000000e+00> : vector<8x128xf32>
      %70 = vector.multi_reduction <add>, %69, %cst_25 [0] : vector<1x8x128xf32> to vector<8x128xf32>
      %c0_26 = arith.constant 0 : index
      %c0_27 = arith.constant 0 : index
      %71 = vector.load %arg3[%c0_26, %c0_27] : memref<8x128xf32, #tpu.memory_space<vmem>>, vector<8x128xf32>
      tpu.vector_store %arg3[%c0_26, %c0_27], %70 {strides = array<i32>} : memref<8x128xf32, #tpu.memory_space<vmem>>, vector<8x128xf32>,
    } else {
    }
    %c0_i32_23 = arith.constant 0 : i32
    %66 = arith.cmpi eq, %arg0, %c0_i32_23 : i32
    %67 = arith.extui %66 : i1 to i32
    %c0_i32_24 = arith.constant 0 : i32
    %68 = arith.cmpi ne, %67, %c0_i32_24 : i32
    scf.if %68 {
      %69 = tpu.iota {dimensions = array<i32: 0>} : vector<8x128xi32>
      %70 = tpu.iota {dimensions = array<i32: 1>} : vector<8x128xi32>
      %c1024_i32 = arith.constant 1024 : i32
      %71 = arith.muli %arg0, %c1024_i32 : i32
      %c128_i32 = arith.constant 128 : i32
      %72 = vector.broadcast %c128_i32 : i32 to vector<8x128xi32>
      %73 = arith.muli %69, %72 : vector<8x128xi32>
      %74 = vector.broadcast %71 : i32 to vector<8x128xi32>
      %75 = arith.addi %74, %73 : vector<8x128xi32>
      %76 = arith.addi %75, %70 : vector<8x128xi32>
      %c256_i32 = arith.constant 256 : i32
      %77 = vector.broadcast %c256_i32 : i32 to vector<8x128xi32>
      %78 = arith.cmpi slt, %76, %77 : vector<8x128xi32>
      %cst_25 = arith.constant 0.000000e+00 : f32
      %79 = vector.broadcast %cst_25 : f32 to vector<8x128xf32>
      %80 = arith.select %78, %62, %79 : vector<8x128xi1>, vector<8x128xf32>
      %81 = vector.shape_cast %80 : vector<8x128xf32> to vector<1x8x128xf32>
      %cst_26 = arith.constant dense<0.000000e+00> : vector<8x128xf32>
      %82 = vector.multi_reduction <add>, %81, %cst_26 [0] : vector<1x8x128xf32> to vector<8x128xf32>
      %c0_27 = arith.constant 0 : index
      %c0_28 = arith.constant 0 : index
      %83 = vector.load %arg3[%c0_27, %c0_28] : memref<8x128xf32, #tpu.memory_space<vmem>>, vector<8x128xf32>
      tpu.vector_store %arg3[%c0_27, %c0_28], %82 {strides = array<i32>} : memref<8x128xf32, #tpu.memory_space<vmem>>, vector<8x128xf32>,
    } else {
    }
    return
  }
  func.func @transform_0(%arg0: i32) -> (i32, i32) {
    %c0_i32 = arith.constant 0 : i32
    %c0_i32_0 = arith.constant 0 : i32
    return %arg0, %c0_i32 : i32, i32
  }
  func.func @transform_1(%arg0: i32) -> (i32, i32) {
    %c0_i32 = arith.constant 0 : i32
    %c0_i32_0 = arith.constant 0 : i32
    return %arg0, %c0_i32 : i32, i32
  }
  func.func @transform_2(%arg0: i32) -> (i32, i32) {
    %c0_i32 = arith.constant 0 : i32
    %c0_i32_0 = arith.constant 0 : i32
    return %arg0, %c0_i32 : i32, i32
  }
}

</mosaic_0001>

<llo_original>
// kernel: poisson_loglikelihood.1
$region0: #{poisson_loglikelihood.1}
  #allocation0 [shape = 'u32[]', space=smem, size = 0x4, offset = 0x4, fixed_abs, tag = 'smem constant byte address 0x4 - core index']
  #allocation1 [shape = 'u32[144,128]{1,0:T(1,128)}', space=vmem, size = 0x12000, scoped, tag = 'internal scratch']
  %s0 = inlined_call_operand.vmem [shape: f32[8,128], index: 0, kind: input, shape index: {}]
  %s1 = inlined_call_operand.vmem [shape: f32[8,128], index: 1, kind: input, shape index: {}]
  %s2 = inlined_call_operand.vmem [shape: f32[8,128], index: 2, kind: output, shape index: {}]
  %s3 = sld [smem:[#allocation0]]
  $region26: #{poisson_loglikelihood.1} parent=0
    _
  %s5 = ssub.s32 1, %s3
  %s6 = scalar_select 0, %s5, %s3
  // Predicated region
  $region2: #{poisson_loglikelihood.1} parent=0 // pred_check
    _
  $region3: #{poisson_loglikelihood.1} parent=0 // pred_check_branch
    %8 = sbr.rel (0) target = $region5
  $region4: #{poisson_loglikelihood.1} parent=0 // pred_region
    _
  $region5: #{poisson_loglikelihood.1} parent=0 // pred_fallthru
    _
  // Predicated region
  $region6: #{poisson_loglikelihood.1} parent=0 // pred_check
    _
  $region7: #{poisson_loglikelihood.1} parent=0 // pred_check_branch
    %10 = sbr.rel (0) target = $region9
  $region8: #{poisson_loglikelihood.1} parent=0 // pred_region
    _
  $region9: #{poisson_loglikelihood.1} parent=0 // pred_fallthru
    _
  %v11 = vld [vmem:[%s0] sm:$0xff]
  %v12 = vld [vmem:[%s1] sm:$0xff]
  %v13 = vmul.f32 %v12, 0.01
  %v14 = vlog2.pop %v13
  %v15 = vmul.f32 %v14, 0.6931472
  %v16 = vmul.f32 %v11, %v15
  %v17 = vsub.f32 %v16, %v13
  %v18 = vadd.f32 %v11, 1.0
  %v19 = vsub.f32 %v18, 1.0
  %v20 = vadd.f32 %v19, 5.5
  %v21 = vadd.f32 %v19, 0.5
  %v22 = vlog2.pop %v20
  %v23 = vmul.f32 %v22, 0.6931472
  %v24 = vmul.f32 %v21, %v23
  %v25 = vadd.f32 %v24, 0.9189385
  %v26 = vsub.f32 %v25, %v20
  %v27 = vadd.f32 %v19, 33.458332
  %v28 = vmul.f32 %v27, %v19
  %v29 = vadd.f32 %v28, 466.3342
  %v30 = vmul.f32 %v29, %v19
  %v31 = vadd.f32 %v30, 3465.7095
  %v32 = vmul.f32 %v31, %v19
  %v33 = vadd.f32 %v32, 14484.914
  %v34 = vmul.f32 %v33, %v19
  %v35 = vadd.f32 %v34, 32281.064
  %v36 = vmul.f32 %v35, %v19
  %v37 = vadd.f32 %v36, 29969.594
  %v38 = vlog2.pop %v37
  %v39 = vmul.f32 %v38, 0.6931472
  %v40 = vadd.f32 %v26, %v39
  %v41 = vadd.f32 %v19, 21.0
  %v42 = vmul.f32 %v41, %v19
  %v43 = vadd.f32 %v42, 175.0
  %v44 = vmul.f32 %v43, %v19
  %v45 = vadd.f32 %v44, 735.0
  %v46 = vmul.f32 %v45, %v19
  %v47 = vadd.f32 %v46, 1624.0
  %v48 = vmul.f32 %v47, %v19
  %v49 = vadd.f32 %v48, 1764.0
  %v50 = vmul.f32 %v49, %v19
  %v51 = vadd.f32 %v50, 720.0
  %v52 = vlog2.pop %v51
  %v53 = vmul.f32 %v52, 0.6931472
  %v54 = vsub.f32 %v40, %v53
  %v55 = vsub.f32 %v17, %v54
  %p56 = scmp.ne.s32.totalorder 0, 0
  // Predicated region
  $region10: #{poisson_loglikelihood.1} parent=0 // pred_check
    %p57 = pneg %p56
  $region11: #{poisson_loglikelihood.1} parent=0 // pred_check_branch
    %59 = sbr.rel (%p57) target = $region13
  $region12: #{poisson_loglikelihood.1} parent=0 // pred_region
    %v60 = vadd.f32 %v55, 0.0
    %61 = vst [vmem:[%s2] sm:$0xff] %v60
  $region13: #{poisson_loglikelihood.1} parent=0 // pred_fallthru
    _
  %p62 = scmp.eq.s32.totalorder 0, 0
  // Predicated region
  $region14: #{poisson_loglikelihood.1} parent=0 // pred_check
    %p63 = pneg %p62
  $region15: #{poisson_loglikelihood.1} parent=0 // pred_check_branch
    %65 = sbr.rel (%p63) target = $region17
  $region16: #{poisson_loglikelihood.1} parent=0 // pred_region
    %v66 = vlaneseq
    %v67 = vshrl.u32 %v66, 7
    %v68 = vlaneseq
    %v69 = vand.u32 %v68, 127
    %s70 = smul.u32 0, 1024
    %v71 = vmul.u32 %v67, 128
    %v72 = vstv %s70
    %v73 = vadd.s32 %v72, %v71
    %v74 = vadd.s32 %v73, %v69
    %vm75 = vcmp.lt.s32.totalorder %v74, 256
    %v76 = vsel %vm75, %v55, 0.0
    %v77 = vadd.f32 %v76, 0.0
    %78 = vst [vmem:[%s2] sm:$0xff] %v77
  $region17: #{poisson_loglikelihood.1} parent=0 // pred_fallthru
    _
  // Predicated region
  $region18: #{poisson_loglikelihood.1} parent=0 // pred_check
    _
  $region19: #{poisson_loglikelihood.1} parent=0 // pred_check_branch
    %80 = sbr.rel (0) target = $region21
  $region20: #{poisson_loglikelihood.1} parent=0 // pred_region
    _
  $region21: #{poisson_loglikelihood.1} parent=0 // pred_fallthru
    _
  // Predicated region
  $region22: #{poisson_loglikelihood.1} parent=0 // pred_check
    _
  $region23: #{poisson_loglikelihood.1} parent=0 // pred_check_branch
    %82 = sbr.rel (0) target = $region25
  $region24: #{poisson_loglikelihood.1} parent=0 // pred_region
    _
  $region25: #{poisson_loglikelihood.1} parent=0 // pred_fallthru
    _

</llo_original>
